<compile_context>
chip_gen: v7x
topology: tpu7x:2x2x1
jax: 0.10.0
libtpu: 0.0.40
codegen_flags: <defaults>
</compile_context>

<pallas_src>
import math

import jax
import jax.numpy as jnp
from jax import lax
from jax.experimental import pallas as pl
from jax.experimental.pallas import tpu as pltpu

# ---------------- model config (small, consistent with the module) ----------
B = 2          # batch
S = 8          # sequence length
H = 32         # hidden_size
NUM_HEADS = 2  # num_attention_heads
HD = H // NUM_HEADS           # attention_head_size
FF = 4 * H                    # intermediate size
BS = B * S                    # batch folded into rows
EPS = 1e-12


def _layer_norm(y, w, b):
    # TF-style LayerNorm: eps inside the sqrt, like the PyTorch reference.
    u = jnp.mean(y, axis=-1, keepdims=True)
    d = y - u
    s = jnp.mean(d * d, axis=-1, keepdims=True)
    return w * (d * lax.rsqrt(s + EPS)) + b


def _gelu(x):
    # exact erf-based gelu, matching the reference implementation
    return x * 0.5 * (1.0 + lax.erf(x / math.sqrt(2.0)))


def layer_kernel(x_ref, mask_ref, wqkv_ref, wo_ref, w1_ref, w2_ref, vecs_ref,
                 out_ref):
    x = x_ref[...]              # (BS, H)
    big_mask = mask_ref[...]    # (BS, BS) additive: block-diag batch + key mask

    # Unpack the single packed (8, FF) bias / LayerNorm vector buffer.
    bqkv = vecs_ref[0:1, 0:3 * H]   # fused qkv bias (1, 3H)
    b1   = vecs_ref[1:2, :]         # (1, FF)
    bo   = vecs_ref[2:3, 0:H]
    b2   = vecs_ref[3:4, 0:H]
    ln1w = vecs_ref[4:5, 0:H]
    ln1b = vecs_ref[5:6, 0:H]
    ln2w = vecs_ref[6:7, 0:H]
    ln2b = vecs_ref[7:8, 0:H]

    # ---- SelfAttention: fused QKV projection (one MXU push, N = 3H) ----
    qkv = jnp.dot(x, wqkv_ref[...], preferred_element_type=jnp.float32) + bqkv

    # Scale the whole query half once (single wide VALU multiply).
    q_all = qkv[:, 0:H] * (1.0 / math.sqrt(HD))        # (BS, H)

    attn = None
    for h in range(NUM_HEADS):                 # static unrolled loop over heads
        lo = h * HD
        qh = q_all[:, lo:lo + HD]                      # (BS, HD)
        kh = qkv[:, H + lo:H + lo + HD]                # (BS, HD)
        vh = qkv[:, 2 * H + lo:2 * H + lo + HD]        # (BS, HD)

        # q @ k^T without an explicit transpose: contract the last dims.
        scores = lax.dot_general(qh, kh, (((1,), (1,)), ((), ())),
                                 preferred_element_type=jnp.float32)  # (BS, BS)
        scores = scores + big_mask
        scores = scores - jnp.max(scores, axis=-1, keepdims=True)
        e = jnp.exp(scores)
        probs = e * pl.reciprocal(jnp.sum(e, axis=-1, keepdims=True),
                                  approx=True)          # softmax(dim=-1)
        # attn_dropout is identity in eval mode
        ctx = jnp.dot(probs, vh, preferred_element_type=jnp.float32)  # (BS, HD)

        # Output projection decomposed over heads: ctx_h @ wo[h*HD:(h+1)*HD, :]
        # -> no lane-wise concatenate of sub-128-lane head chunks.
        contrib = jnp.dot(ctx, wo_ref[lo:lo + HD, :],
                          preferred_element_type=jnp.float32)         # (BS, H)
        attn = contrib if attn is None else attn + contrib
    attn = attn + bo
    # out_dropout is identity in eval mode
    h1 = _layer_norm(attn + x, ln1w, ln1b)

    # ---- Intermediate (FFN) ----
    inter = _gelu(jnp.dot(h1, w1_ref[...],
                          preferred_element_type=jnp.float32) + b1)
    ffn = jnp.dot(inter, w2_ref[...], preferred_element_type=jnp.float32) + b2
    # hidden dropout is identity in eval mode
    out_ref[...] = _layer_norm(ffn + h1, ln2w, ln2b)


@jax.jit
def transformer_layer(x, mask, params):
    """x: (B, S, H) f32, mask: (B, 1, S) f32 additive mask."""
    (wq, bq, wk, bk, wv, bv, wo, bo, ln1w, ln1b,
     w1, b1, w2, b2, ln2w, ln2b) = params

    # ---- parameter packing: fewer, larger DMA buffers ----
    wqkv = jnp.concatenate([wq, wk, wv], axis=1)                 # (H, 3H)

    def pad(v):  # pad a (1, k) vector to (1, FF) lanes
        return jnp.pad(v, ((0, 0), (0, FF - v.shape[-1])))

    vecs = jnp.concatenate([
        pad(jnp.concatenate([bq, bk, bv], axis=1)),              # row 0: qkv bias
        pad(b1),                                                 # row 1
        pad(bo), pad(b2),                                        # rows 2, 3
        pad(ln1w), pad(ln1b), pad(ln2w), pad(ln2b),              # rows 4..7
    ], axis=0)                                                   # (8, FF)

    # ---- fold batch into rows; block-diagonal additive attention mask ----
    x2 = x.reshape(BS, H)
    m = mask.reshape(B, S)
    blk = (1.0 - jnp.eye(B, dtype=jnp.float32)) * (-1e9)         # 0 diag, -1e9 off
    big_mask = jnp.broadcast_to(
        blk[:, None, :, None] + m[None, None, :, :], (B, S, B, S)
    ).reshape(BS, BS)

    vmem = pl.BlockSpec(memory_space=pltpu.MemorySpace.VMEM)

    flops = (2 * BS * H * 3 * H                       # fused QKV
             + NUM_HEADS * (2 * BS * BS * HD * 2      # scores + ctx
                            + 2 * BS * HD * H)        # per-head output proj
             + 2 * 2 * BS * H * FF)                   # FFN
    transcendentals = NUM_HEADS * BS * BS + BS * FF + 6 * BS
    bytes_accessed = 4 * (x2.size + big_mask.size + wqkv.size + wo.size +
                          w1.size + w2.size + vecs.size + BS * H)

    out = pl.pallas_call(
        layer_kernel,
        out_shape=jax.ShapeDtypeStruct((BS, H), jnp.float32),
        in_specs=[vmem] * 7,
        out_specs=vmem,
        cost_estimate=pl.CostEstimate(flops=flops,
                                      transcendentals=transcendentals,
                                      bytes_accessed=bytes_accessed),
    )(x2, big_mask, wqkv, wo, w1, w2, vecs)
    return out.reshape(B, S, H)


# -------------------- pure-JAX reference for verification -------------------
def reference_layer(x, mask, params):
    (wq, bq, wk, bk, wv, bv, wo, bo, ln1w, ln1b,
     w1, b1, w2, b2, ln2w, ln2b) = params

    def ln(y, w, b):
        u = jnp.mean(y, -1, keepdims=True)
        s = jnp.mean((y - u) ** 2, -1, keepdims=True)
        return w[0] * ((y - u) / jnp.sqrt(s + EPS)) + b[0]

    q = x @ wq + bq[0]
    k = x @ wk + bk[0]
    v = x @ wv + bv[0]

    def split(t):  # (B,S,H) -> (B,nh,S,hd)
        return t.reshape(B, S, NUM_HEADS, HD).transpose(0, 2, 1, 3)

    qh, kh, vh = split(q), split(k), split(v)
    scores = jnp.einsum("bhqd,bhkd->bhqk", qh, kh) / math.sqrt(HD)
    scores = scores + mask[:, None, :, :]          # (B,1,1,S) broadcast
    probs = jax.nn.softmax(scores, axis=-1)
    ctx = jnp.einsum("bhqk,bhkd->bhqd", probs, vh)
    ctx = ctx.transpose(0, 2, 1, 3).reshape(B, S, H)
    attn = ctx @ wo + bo[0]
    h1 = ln(attn + x, ln1w, ln1b)
    inter = h1 @ w1 + b1[0]
    inter = inter * 0.5 * (1.0 + lax.erf(inter / math.sqrt(2.0)))
    ffn = inter @ w2 + b2[0]
    return ln(ffn + h1, ln2w, ln2b)


if __name__ == "__main__":
    key = jax.random.PRNGKey(0)
    keys = jax.random.split(key, 12)

    # Deterministic synthetic parameters (shapes from the module __init__).
    std = 0.02
    wq = std * jax.random.normal(keys[0], (H, H), jnp.float32)
    wk = std * jax.random.normal(keys[1], (H, H), jnp.float32)
    wv = std * jax.random.normal(keys[2], (H, H), jnp.float32)
    wo = std * jax.random.normal(keys[3], (H, H), jnp.float32)
    w1 = std * jax.random.normal(keys[4], (H, FF), jnp.float32)
    w2 = std * jax.random.normal(keys[5], (FF, H), jnp.float32)
    bq = jnp.zeros((1, H), jnp.float32)
    bk = 0.01 * jnp.ones((1, H), jnp.float32)
    bv = jnp.zeros((1, H), jnp.float32)
    bo = 0.01 * jnp.ones((1, H), jnp.float32)
    b1 = jnp.zeros((1, FF), jnp.float32)
    b2 = jnp.zeros((1, H), jnp.float32)
    ln1w = jnp.ones((1, H), jnp.float32)
    ln1b = jnp.zeros((1, H), jnp.float32)
    ln2w = jnp.ones((1, H), jnp.float32)
    ln2b = jnp.zeros((1, H), jnp.float32)

    params = (wq, bq, wk, bk, wv, bv, wo, bo, ln1w, ln1b,
              w1, b1, w2, b2, ln2w, ln2b)

    x = jax.random.normal(keys[6], (B, S, H), jnp.float32)

    # additive attention mask: batch 0 attends everywhere, batch 1 masks the
    # last two key positions (-10000 like BERT's extended attention mask).
    valid = jnp.ones((B, 1, S), jnp.float32)
    valid = valid.at[1, 0, -2:].set(0.0)
    mask = (1.0 - valid) * -10000.0

    out = transformer_layer(x, mask, params)
    jax.block_until_ready(out)

    ref = reference_layer(x, mask, params)
    assert out.shape == (B, S, H)
    # tolerance accounts for pl.reciprocal(approx=True) in the softmax denom
    assert jnp.allclose(out, ref, atol=2e-3, rtol=2e-3)

    print("KERNEL_OK")
</pallas_src>

<mosaic_0001>
module attributes {stable_mosaic.version = 11 : i64} {
  func.func @layer_kernel(%arg0: memref<16x32xf32, #tpu.memory_space<vmem>>, %arg1: memref<16x16xf32, #tpu.memory_space<vmem>>, %arg2: memref<32x96xf32, #tpu.memory_space<vmem>>, %arg3: memref<32x32xf32, #tpu.memory_space<vmem>>, %arg4: memref<32x128xf32, #tpu.memory_space<vmem>>, %arg5: memref<128x32xf32, #tpu.memory_space<vmem>>, %arg6: memref<8x128xf32, #tpu.memory_space<vmem>>, %arg7: memref<16x32xf32, #tpu.memory_space<vmem>>) attributes {dimension_semantics = [], scalar_prefetch = 0 : i64, scratch_operands = 0 : i64, tpu.core_type = #tpu.core_type<tc>} {
    %c0 = arith.constant 0 : index
    %c0_0 = arith.constant 0 : index
    %0 = vector.load %arg0[%c0, %c0_0] : memref<16x32xf32, #tpu.memory_space<vmem>>, vector<16x32xf32>
    %c0_1 = arith.constant 0 : index
    %c0_2 = arith.constant 0 : index
    %1 = vector.load %arg1[%c0_1, %c0_2] : memref<16x16xf32, #tpu.memory_space<vmem>>, vector<16x16xf32>
    %c0_3 = arith.constant 0 : index
    %c0_4 = arith.constant 0 : index
    %2 = vector.load %arg6[%c0_3, %c0_4] : memref<8x128xf32, #tpu.memory_space<vmem>>, vector<1x96xf32>
    %c1 = arith.constant 1 : index
    %c0_5 = arith.constant 0 : index
    %3 = vector.load %arg6[%c1, %c0_5] : memref<8x128xf32, #tpu.memory_space<vmem>>, vector<1x128xf32>
    %c2 = arith.constant 2 : index
    %c0_6 = arith.constant 0 : index
    %4 = vector.load %arg6[%c2, %c0_6] : memref<8x128xf32, #tpu.memory_space<vmem>>, vector<1x32xf32>
    %c3 = arith.constant 3 : index
    %c0_7 = arith.constant 0 : index
    %5 = vector.load %arg6[%c3, %c0_7] : memref<8x128xf32, #tpu.memory_space<vmem>>, vector<1x32xf32>
    %c4 = arith.constant 4 : index
    %c0_8 = arith.constant 0 : index
    %6 = vector.load %arg6[%c4, %c0_8] : memref<8x128xf32, #tpu.memory_space<vmem>>, vector<1x32xf32>
    %c5 = arith.constant 5 : index
    %c0_9 = arith.constant 0 : index
    %7 = vector.load %arg6[%c5, %c0_9] : memref<8x128xf32, #tpu.memory_space<vmem>>, vector<1x32xf32>
    %c6 = arith.constant 6 : index
    %c0_10 = arith.constant 0 : index
    %8 = vector.load %arg6[%c6, %c0_10] : memref<8x128xf32, #tpu.memory_space<vmem>>, vector<1x32xf32>
    %c7 = arith.constant 7 : index
    %c0_11 = arith.constant 0 : index
    %9 = vector.load %arg6[%c7, %c0_11] : memref<8x128xf32, #tpu.memory_space<vmem>>, vector<1x32xf32>
    %c0_12 = arith.constant 0 : index
    %c0_13 = arith.constant 0 : index
    %10 = vector.load %arg2[%c0_12, %c0_13] : memref<32x96xf32, #tpu.memory_space<vmem>>, vector<32x96xf32>
    %cst = arith.constant dense<0.000000e+00> : vector<16x96xf32>
    %11 = tpu.matmul %0, %10, %cst {dimension_numbers = #tpu.dot_dimension_numbers<[1], [0], [0], [1], [0, 0, 1, 1], [], []>} : vector<16x32xf32>, vector<32x96xf32>, vector<16x96xf32> -> vector<16x96xf32>
    %12 = vector.broadcast %2 : vector<1x96xf32> to vector<16x96xf32>
    %13 = arith.addf %11, %12 : vector<16x96xf32>
    %14 = vector.extract_strided_slice %13 {offsets = [0, 0], sizes = [16, 32], strides = [1, 1]} : vector<16x96xf32> to vector<16x32xf32>
    %cst_14 = arith.constant 2.500000e-01 : f32
    %15 = vector.broadcast %cst_14 : f32 to vector<16x32xf32>
    %16 = arith.mulf %14, %15 : vector<16x32xf32>
    %17 = vector.extract_strided_slice %16 {offsets = [0, 0], sizes = [16, 16], strides = [1, 1]} : vector<16x32xf32> to vector<16x16xf32>
    %18 = vector.extract_strided_slice %13 {offsets = [0, 32], sizes = [16, 16], strides = [1, 1]} : vector<16x96xf32> to vector<16x16xf32>
    %19 = vector.extract_strided_slice %13 {offsets = [0, 64], sizes = [16, 16], strides = [1, 1]} : vector<16x96xf32> to vector<16x16xf32>
    %cst_15 = arith.constant dense<0.000000e+00> : vector<16x16xf32>
    %20 = tpu.matmul %17, %18, %cst_15 {dimension_numbers = #tpu.dot_dimension_numbers<[1], [1], [0], [0], [0, 0, 1, 0], [], []>} : vector<16x16xf32>, vector<16x16xf32>, vector<16x16xf32> -> vector<16x16xf32>
    %21 = arith.addf %20, %1 : vector<16x16xf32>
    %cst_16 = arith.constant dense<0xFF800000> : vector<16xf32>
    %22 = vector.multi_reduction <maximumf>, %21, %cst_16 [1] : vector<16x16xf32> to vector<16xf32>
    %23 = vector.shape_cast %22 : vector<16xf32> to vector<16x1xf32>
    %24 = vector.broadcast %23 : vector<16x1xf32> to vector<16x16xf32>
    %25 = arith.subf %21, %24 : vector<16x16xf32>
    %26 = math.exp %25 : vector<16x16xf32>
    %cst_17 = arith.constant dense<0.000000e+00> : vector<16xf32>
    %27 = vector.multi_reduction <add>, %26, %cst_17 [1] : vector<16x16xf32> to vector<16xf32>
    %28 = vector.shape_cast %27 : vector<16xf32> to vector<16x1xf32>
    %29 = tpu.reciprocal %28 {approx = true} : vector<16x1xf32> -> vector<16x1xf32>
    %30 = vector.broadcast %29 : vector<16x1xf32> to vector<16x16xf32>
    %31 = arith.mulf %26, %30 : vector<16x16xf32>
    %cst_18 = arith.constant dense<0.000000e+00> : vector<16x16xf32>
    %32 = tpu.matmul %31, %19, %cst_18 {dimension_numbers = #tpu.dot_dimension_numbers<[1], [0], [0], [1], [0, 0, 1, 1], [], []>} : vector<16x16xf32>, vector<16x16xf32>, vector<16x16xf32> -> vector<16x16xf32>
    %c0_19 = arith.constant 0 : index
    %c0_20 = arith.constant 0 : index
    %33 = vector.load %arg3[%c0_19, %c0_20] : memref<32x32xf32, #tpu.memory_space<vmem>>, vector<16x32xf32>
    %cst_21 = arith.constant dense<0.000000e+00> : vector<16x32xf32>
    %34 = tpu.matmul %32, %33, %cst_21 {dimension_numbers = #tpu.dot_dimension_numbers<[1], [0], [0], [1], [0, 0, 1, 1], [], []>} : vector<16x16xf32>, vector<16x32xf32>, vector<16x32xf32> -> vector<16x32xf32>
    %35 = vector.extract_strided_slice %16 {offsets = [0, 16], sizes = [16, 16], strides = [1, 1]} : vector<16x32xf32> to vector<16x16xf32>
    %36 = vector.extract_strided_slice %13 {offsets = [0, 48], sizes = [16, 16], strides = [1, 1]} : vector<16x96xf32> to vector<16x16xf32>
    %37 = vector.extract_strided_slice %13 {offsets = [0, 80], sizes = [16, 16], strides = [1, 1]} : vector<16x96xf32> to vector<16x16xf32>
    %cst_22 = arith.constant dense<0.000000e+00> : vector<16x16xf32>
    %38 = tpu.matmul %35, %36, %cst_22 {dimension_numbers = #tpu.dot_dimension_numbers<[1], [1], [0], [0], [0, 0, 1, 0], [], []>} : vector<16x16xf32>, vector<16x16xf32>, vector<16x16xf32> -> vector<16x16xf32>
    %39 = arith.addf %38, %1 : vector<16x16xf32>
    %cst_23 = arith.constant dense<0xFF800000> : vector<16xf32>
    %40 = vector.multi_reduction <maximumf>, %39, %cst_23 [1] : vector<16x16xf32> to vector<16xf32>
    %41 = vector.shape_cast %40 : vector<16xf32> to vector<16x1xf32>
    %42 = vector.broadcast %41 : vector<16x1xf32> to vector<16x16xf32>
    %43 = arith.subf %39, %42 : vector<16x16xf32>
    %44 = math.exp %43 : vector<16x16xf32>
    %cst_24 = arith.constant dense<0.000000e+00> : vector<16xf32>
    %45 = vector.multi_reduction <add>, %44, %cst_24 [1] : vector<16x16xf32> to vector<16xf32>
    %46 = vector.shape_cast %45 : vector<16xf32> to vector<16x1xf32>
    %47 = tpu.reciprocal %46 {approx = true} : vector<16x1xf32> -> vector<16x1xf32>
    %48 = vector.broadcast %47 : vector<16x1xf32> to vector<16x16xf32>
    %49 = arith.mulf %44, %48 : vector<16x16xf32>
    %cst_25 = arith.constant dense<0.000000e+00> : vector<16x16xf32>
    %50 = tpu.matmul %49, %37, %cst_25 {dimension_numbers = #tpu.dot_dimension_numbers<[1], [0], [0], [1], [0, 0, 1, 1], [], []>} : vector<16x16xf32>, vector<16x16xf32>, vector<16x16xf32> -> vector<16x16xf32>
    %c16 = arith.constant 16 : index
    %c0_26 = arith.constant 0 : index
    %51 = vector.load %arg3[%c16, %c0_26] : memref<32x32xf32, #tpu.memory_space<vmem>>, vector<16x32xf32>
    %cst_27 = arith.constant dense<0.000000e+00> : vector<16x32xf32>
    %52 = tpu.matmul %50, %51, %cst_27 {dimension_numbers = #tpu.dot_dimension_numbers<[1], [0], [0], [1], [0, 0, 1, 1], [], []>} : vector<16x16xf32>, vector<16x32xf32>, vector<16x32xf32> -> vector<16x32xf32>
    %53 = arith.addf %34, %52 : vector<16x32xf32>
    %54 = vector.broadcast %4 : vector<1x32xf32> to vector<16x32xf32>
    %55 = arith.addf %53, %54 : vector<16x32xf32>
    %56 = arith.addf %55, %0 : vector<16x32xf32>
    %cst_28 = arith.constant dense<0.000000e+00> : vector<16xf32>
    %57 = vector.multi_reduction <add>, %56, %cst_28 [1] : vector<16x32xf32> to vector<16xf32>
    %58 = vector.shape_cast %57 : vector<16xf32> to vector<16x1xf32>
    %cst_29 = arith.constant 3.200000e+01 : f32
    %59 = vector.broadcast %cst_29 : f32 to vector<16x1xf32>
    %60 = arith.divf %58, %59 : vector<16x1xf32>
    %61 = vector.broadcast %60 : vector<16x1xf32> to vector<16x32xf32>
    %62 = arith.subf %56, %61 : vector<16x32xf32>
    %63 = arith.mulf %62, %62 : vector<16x32xf32>
    %cst_30 = arith.constant dense<0.000000e+00> : vector<16xf32>
    %64 = vector.multi_reduction <add>, %63, %cst_30 [1] : vector<16x32xf32> to vector<16xf32>
    %65 = vector.shape_cast %64 : vector<16xf32> to vector<16x1xf32>
    %cst_31 = arith.constant 3.200000e+01 : f32
    %66 = vector.broadcast %cst_31 : f32 to vector<16x1xf32>
    %67 = arith.divf %65, %66 : vector<16x1xf32>
    %cst_32 = arith.constant 9.99999996E-13 : f32
    %68 = vector.broadcast %cst_32 : f32 to vector<16x1xf32>
    %69 = arith.addf %67, %68 : vector<16x1xf32>
    %70 = math.rsqrt %69 : vector<16x1xf32>
    %71 = vector.broadcast %70 : vector<16x1xf32> to vector<16x32xf32>
    %72 = arith.mulf %62, %71 : vector<16x32xf32>
    %73 = vector.broadcast %6 : vector<1x32xf32> to vector<16x32xf32>
    %74 = arith.mulf %73, %72 : vector<16x32xf32>
    %75 = vector.broadcast %7 : vector<1x32xf32> to vector<16x32xf32>
    %76 = arith.addf %74, %75 : vector<16x32xf32>
    %c0_33 = arith.constant 0 : index
    %c0_34 = arith.constant 0 : index
    %77 = vector.load %arg4[%c0_33, %c0_34] : memref<32x128xf32, #tpu.memory_space<vmem>>, vector<32x128xf32>
    %cst_35 = arith.constant dense<0.000000e+00> : vector<16x128xf32>
    %78 = tpu.matmul %76, %77, %cst_35 {dimension_numbers = #tpu.dot_dimension_numbers<[1], [0], [0], [1], [0, 0, 1, 1], [], []>} : vector<16x32xf32>, vector<32x128xf32>, vector<16x128xf32> -> vector<16x128xf32>
    %79 = vector.broadcast %3 : vector<1x128xf32> to vector<16x128xf32>
    %80 = arith.addf %78, %79 : vector<16x128xf32>
    %cst_36 = arith.constant 5.000000e-01 : f32
    %81 = vector.broadcast %cst_36 : f32 to vector<16x128xf32>
    %82 = arith.mulf %80, %81 : vector<16x128xf32>
    %cst_37 = arith.constant 1.41421354 : f32
    %83 = vector.broadcast %cst_37 : f32 to vector<16x128xf32>
    %84 = arith.divf %80, %83 : vector<16x128xf32>
    %85 = math.erf %84 : vector<16x128xf32>
    %cst_38 = arith.constant 1.000000e+00 : f32
    %86 = vector.broadcast %cst_38 : f32 to vector<16x128xf32>
    %87 = arith.addf %86, %85 : vector<16x128xf32>
    %88 = arith.mulf %82, %87 : vector<16x128xf32>
    %c0_39 = arith.constant 0 : index
    %c0_40 = arith.constant 0 : index
    %89 = vector.load %arg5[%c0_39, %c0_40] : memref<128x32xf32, #tpu.memory_space<vmem>>, vector<128x32xf32>
    %cst_41 = arith.constant dense<0.000000e+00> : vector<16x32xf32>
    %90 = tpu.matmul %88, %89, %cst_41 {dimension_numbers = #tpu.dot_dimension_numbers<[1], [0], [0], [1], [0, 0, 1, 1], [], []>} : vector<16x128xf32>, vector<128x32xf32>, vector<16x32xf32> -> vector<16x32xf32>
    %91 = vector.broadcast %5 : vector<1x32xf32> to vector<16x32xf32>
    %92 = arith.addf %90, %91 : vector<16x32xf32>
    %93 = arith.addf %92, %76 : vector<16x32xf32>
    %cst_42 = arith.constant dense<0.000000e+00> : vector<16xf32>
    %94 = vector.multi_reduction <add>, %93, %cst_42 [1] : vector<16x32xf32> to vector<16xf32>
    %95 = vector.shape_cast %94 : vector<16xf32> to vector<16x1xf32>
    %cst_43 = arith.constant 3.200000e+01 : f32
    %96 = vector.broadcast %cst_43 : f32 to vector<16x1xf32>
    %97 = arith.divf %95, %96 : vector<16x1xf32>
    %98 = vector.broadcast %97 : vector<16x1xf32> to vector<16x32xf32>
    %99 = arith.subf %93, %98 : vector<16x32xf32>
    %100 = arith.mulf %99, %99 : vector<16x32xf32>
    %cst_44 = arith.constant dense<0.000000e+00> : vector<16xf32>
    %101 = vector.multi_reduction <add>, %100, %cst_44 [1] : vector<16x32xf32> to vector<16xf32>
    %102 = vector.shape_cast %101 : vector<16xf32> to vector<16x1xf32>
    %cst_45 = arith.constant 3.200000e+01 : f32
    %103 = vector.broadcast %cst_45 : f32 to vector<16x1xf32>
    %104 = arith.divf %102, %103 : vector<16x1xf32>
    %cst_46 = arith.constant 9.99999996E-13 : f32
    %105 = vector.broadcast %cst_46 : f32 to vector<16x1xf32>
    %106 = arith.addf %104, %105 : vector<16x1xf32>
    %107 = math.rsqrt %106 : vector<16x1xf32>
    %108 = vector.broadcast %107 : vector<16x1xf32> to vector<16x32xf32>
    %109 = arith.mulf %99, %108 : vector<16x32xf32>
    %110 = vector.broadcast %8 : vector<1x32xf32> to vector<16x32xf32>
    %111 = arith.mulf %110, %109 : vector<16x32xf32>
    %112 = vector.broadcast %9 : vector<1x32xf32> to vector<16x32xf32>
    %113 = arith.addf %111, %112 : vector<16x32xf32>
    %c0_47 = arith.constant 0 : index
    %c0_48 = arith.constant 0 : index
    %114 = vector.load %arg7[%c0_47, %c0_48] : memref<16x32xf32, #tpu.memory_space<vmem>>, vector<16x32xf32>
    tpu.vector_store %arg7[%c0_47, %c0_48], %113 {strides = array<i32>} : memref<16x32xf32, #tpu.memory_space<vmem>>, vector<16x32xf32>,
    return
  }
}

</mosaic_0001>

<llo_original>
// kernel: transformer_layer.1
$region0: #{transformer_layer.1}
  #allocation0 [shape = 'u32[]', space=smem, size = 0x4, offset = 0x4, fixed_abs, tag = 'smem constant byte address 0x4 - core index']
  #allocation1 [shape = 'u32[144,128]{1,0:T(1,128)}', space=vmem, size = 0x12000, scoped, tag = 'internal scratch']
  %s0 = inlined_call_operand.vmem [shape: f32[16,32], index: 0, kind: input, shape index: {}]
  %s1 = inlined_call_operand.vmem [shape: f32[16,16], index: 1, kind: input, shape index: {}]
  %s2 = inlined_call_operand.vmem [shape: f32[32,96], index: 2, kind: input, shape index: {}]
  %s3 = inlined_call_operand.vmem [shape: f32[32,32], index: 3, kind: input, shape index: {}]
  %s4 = inlined_call_operand.vmem [shape: f32[32,128], index: 4, kind: input, shape index: {}]
  %s5 = inlined_call_operand.vmem [shape: f32[128,32], index: 5, kind: input, shape index: {}]
  %s6 = inlined_call_operand.vmem [shape: f32[8,128], index: 6, kind: input, shape index: {}]
  %s7 = inlined_call_operand.hbm [shape: f32[16,32], index: 7, kind: output, shape index: {}]
  %s8 = sld [smem:[#allocation0]]
  $region38: #{transformer_layer.1} parent=0
    _
  %s10 = ssub.s32 1, %s8
  %s11 = scalar_select 0, %s10, %s8
  $region1: #{transformer_layer.1} parent=0
    #allocation2 [shape = 'u8[8192]{0}', space=vmem, size = 0x2000, scoped, tag = 'output window, operand 0, single buffered']
    #allocation3 [shape = 's32[1]{0}', space=sflag, size = 0x4, scoped, tag = 'scoped memory for transformer_layer.1']
    %12 = vsyncpa [#allocation3], 0
    // Predicated region
    $region2: #{transformer_layer.1} parent=1 // pred_check
      _
    $region3: #{transformer_layer.1} parent=1 // pred_check_branch
      %14 = sbr.rel (0) target = $region5
    $region4: #{transformer_layer.1} parent=1 // pred_region
      _
    $region5: #{transformer_layer.1} parent=1 // pred_fallthru
      _
    // Predicated region
    $region6: #{transformer_layer.1} parent=1 // pred_check
      _
    $region7: #{transformer_layer.1} parent=1 // pred_check_branch
      %16 = sbr.rel (0) target = $region9
    $region8: #{transformer_layer.1} parent=1 // pred_region
      _
    $region9: #{transformer_layer.1} parent=1 // pred_fallthru
      _
    // Predicated region
    $region10: #{transformer_layer.1} parent=1 // pred_check
      _
    $region11: #{transformer_layer.1} parent=1 // pred_check_branch
      %18 = sbr.rel (0) target = $region13
    $region12: #{transformer_layer.1} parent=1 // pred_region
      _
    $region13: #{transformer_layer.1} parent=1 // pred_fallthru
      _
    // Predicated region
    $region14: #{transformer_layer.1} parent=1 // pred_check
      _
    $region15: #{transformer_layer.1} parent=1 // pred_check_branch
      %20 = sbr.rel (0) target = $region17
    $region16: #{transformer_layer.1} parent=1 // pred_region
      _
    $region17: #{transformer_layer.1} parent=1 // pred_fallthru
      _
    // Predicated region
    $region18: #{transformer_layer.1} parent=1 // pred_check
      _
    $region19: #{transformer_layer.1} parent=1 // pred_check_branch
      %22 = sbr.rel (0) target = $region21
    $region20: #{transformer_layer.1} parent=1 // pred_region
      _
    $region21: #{transformer_layer.1} parent=1 // pred_fallthru
      _
    // Predicated region
    $region22: #{transformer_layer.1} parent=1 // pred_check
      _
    $region23: #{transformer_layer.1} parent=1 // pred_check_branch
      %24 = sbr.rel (0) target = $region25
    $region24: #{transformer_layer.1} parent=1 // pred_region
      _
    $region25: #{transformer_layer.1} parent=1 // pred_fallthru
      _
    // Predicated region
    $region26: #{transformer_layer.1} parent=1 // pred_check
      _
    $region27: #{transformer_layer.1} parent=1 // pred_check_branch
      %26 = sbr.rel (0) target = $region29
    $region28: #{transformer_layer.1} parent=1 // pred_region
      _
    $region29: #{transformer_layer.1} parent=1 // pred_fallthru
      _
    %v27 = vld [vmem:[%s0] sm:$0xff]
    %v28 = vld [vmem:[%s0 + $0x8] sm:$0xff]
    %v29 = vld [vmem:[%s1] sm:$0xff]
    %v30 = vld [vmem:[%s1 + $0x8] sm:$0xff]
    %v31 = vld [vmem:[%s6] sm:$0x1]
    %v32 = vld [vmem:[%s6 + $0x1] sm:$0x1]
    %v33 = vld [vmem:[%s6 + $0x2] sm:$0x1]
    %v34 = vld [vmem:[%s6 + $0x3] sm:$0x1]
    %v35 = vld [vmem:[%s6 + $0x4] sm:$0x1]
    %v36 = vld [vmem:[%s6 + $0x5] sm:$0x1]
    %v37 = vld [vmem:[%s6 + $0x6] sm:$0x1]
    %v38 = vld [vmem:[%s6 + $0x7] sm:$0x1]
    %v39 = vld [vmem:[%s2] sm:$0xff]
    %v40 = vld [vmem:[%s2 + $0x8] sm:$0xff]
    %v41 = vld [vmem:[%s2 + $0x10] sm:$0xff]
    %v42 = vld [vmem:[%s2 + $0x18] sm:$0xff]
    %v43 = vlaneseq
    %v44 = vshrl.u32 %v43, 7
    %v45 = vsub.s32 0, %v44
    %v46 = vrot.slane %v31, %v45
    %vm47 = vcmask 261120
    %v49 = vsel %vm47, %v27, 0
    %v52 = vsel %vm47, %v28, 0
    %54 = vmatprep.subr.mxu0 0.0
    %55 = vmatpush1.msra.mxu0 %v39
    %56 = vmatprep.subr.mxu0 0.0
    %57 = vmatpush1.msra.mxu0 %v40
    %58 = vmatprep.subr.mxu0 0.0
    %59 = vmatpush1.msra.mxu0 %v41
    %60 = vmatprep.subr.mxu0 0.0
    %61 = vmatpush1.msra.mxu0 %v42
    %62 = vmatprep.subr.mxu0 0.0
    %63 = vmatpush1.msra.mxu0 0.0
    %64 = vmatprep.subr.mxu0 0.0
    %65 = vmatpush1.msra.mxu0 0.0
    %66 = vmatprep.subr.mxu0 0.0
    %67 = vmatpush1.msra.mxu0 0.0
    %68 = vmatprep.subr.mxu0 0.0
    %69 = vmatpush1.msra.mxu0 0.0
    %70 = vmatprep.subr.mxu0 0.0
    %71 = vmatpush1.msra.mxu0 0.0
    %72 = vmatprep.subr.mxu0 0.0
    %73 = vmatpush1.msra.mxu0 0.0
    %74 = vmatprep.subr.mxu0 0.0
    %75 = vmatpush1.msra.mxu0 0.0
    %76 = vmatprep.subr.mxu0 0.0
    %77 = vmatpush1.msra.mxu0 0.0
    %78 = vmatprep.subr.mxu0 0.0
    %79 = vmatpush1.msra.mxu0 0.0
    %80 = vmatprep.subr.mxu0 0.0
    %81 = vmatpush1.msra.mxu0 0.0
    %82 = vmatprep.subr.mxu0 0.0
    %83 = vmatpush1.msra.mxu0 0.0
    %84 = vmatprep.subr.mxu0 0.0
    %85 = vmatpush1.msra.mxu0 0.0
    %86 = vmatprep.subr.mxu0 0.0
    %87 = vmatpush1.msra.mxu0 0.0
    %88 = vmatprep.subr.mxu0 0.0
    %89 = vmatpush1.msra.mxu0 0.0
    %90 = vmatprep.subr.mxu0 0.0
    %91 = vmatpush1.msra.mxu0 0.0
    %92 = vmatprep.subr.mxu0 0.0
    %93 = vmatpush1.msra.mxu0 0.0
    %94 = vmatprep.subr.mxu0 0.0
    %95 = vmatpush1.msra.mxu0 0.0
    %96 = vmatprep.subr.mxu0 0.0
    %97 = vmatpush1.msra.mxu0 0.0
    %98 = vmatprep.subr.mxu0 0.0
    %99 = vmatpush1.msra.mxu0 0.0
    %100 = vmatprep.subr.mxu0 0.0
    %101 = vmatpush1.msra.mxu0 0.0
    %102 = vmatprep.subr.mxu0 0.0
    %103 = vmatpush1.msra.mxu0 0.0
    %104 = vmatprep.subr.mxu0 0.0
    %105 = vmatpush1.msra.mxu0 0.0
    %106 = vmatprep.subr.mxu0 0.0
    %107 = vmatpush1.msra.mxu0 0.0
    %108 = vmatprep.subr.mxu0 0.0
    %109 = vmatpush1.msra.mxu0 0.0
    %110 = vmatprep.subr.mxu0 0.0
    %111 = vmatpush1.msra.mxu0 0.0
    %112 = vmatprep.subr.mxu0 0.0
    %113 = vmatpush1.msra.mxu0 0.0
    %114 = vmatprep.subr.mxu0 0.0
    %115 = vmatpush1.msra.mxu0 0.0
    %116 = vmatprep.subr.mxu0 0.0
    %117 = vmatpush1.msra.mxu0 0.0
    %118 = vmatprep.mubr.f32.mxu0 0.0
    %119 = vmatmul.mubr.f32.gmra.mrb[0].mxu0 %v49
    %v120 = vpop.f32.mrb[0].mxu0
    %v121 = vadd.f32 %v46, %v120
    %v122 = vpop.f32.mrb[0].mxu0
    %123 = vmatprep.mubr.f32.mxu0 0.0
    %124 = vmatmul.mubr.f32.gmra.mrb[0].mxu0 %v52
    %v125 = vpop.f32.mrb[0].mxu0
    %v126 = vadd.f32 %v46, %v125
    %v127 = vpop.f32.mrb[0].mxu0
    %128 = vdwg.mxu0
    %v129 = vmul.f32 %v121, 0.25
    %v130 = vmul.f32 %v126, 0.25
    %133 = vrot.lane.b32.xlu0 %v121, 96
    %v134 = vpop.permute.xlu0 %133
    %135 = vrot.lane.b32.xlu0 %v126, 96
    %v136 = vpop.permute.xlu0 %135
    %vm137 = vcmask 130048
    %v139 = vsel %vm137, %v129, 0
    %v142 = vsel %vm137, %v130, 0
    %v144 = vsel %vm137, %v134, 0
    %v146 = vsel %vm137, %v136, 0
    %148 = vmatprep.subr.mxu0 0.0
    %149 = vmatpush1.xpose.msra.mxu0 %v144
    %150 = vmatprep.subr.mxu0 0.0
    %151 = vmatpush1.xpose.msra.mxu0 %v146
    %152 = vmatprep.subr.mxu0 0.0
    %153 = vmatpush1.xpose.msra.mxu0 0.0
    %154 = vmatprep.subr.mxu0 0.0
    %155 = vmatpush1.xpose.msra.mxu0 0.0
    %156 = vmatprep.subr.mxu0 0.0
    %157 = vmatpush1.xpose.msra.mxu0 0.0
    %158 = vmatprep.subr.mxu0 0.0
    %159 = vmatpush1.xpose.msra.mxu0 0.0
    %160 = vmatprep.subr.mxu0 0.0
    %161 = vmatpush1.xpose.msra.mxu0 0.0
    %162 = vmatprep.subr.mxu0 0.0
    %163 = vmatpush1.xpose.msra.mxu0 0.0
    %164 = vmatprep.subr.mxu0 0.0
    %165 = vmatpush1.xpose.msra.mxu0 0.0
    %166 = vmatprep.subr.mxu0 0.0
    %167 = vmatpush1.xpose.msra.mxu0 0.0
    %168 = vmatprep.subr.mxu0 0.0
    %169 = vmatpush1.xpose.msra.mxu0 0.0
    %170 = vmatprep.subr.mxu0 0.0
    %171 = vmatpush1.xpose.msra.mxu0 0.0
    %172 = vmatprep.subr.mxu0 0.0
    %173 = vmatpush1.xpose.msra.mxu0 0.0
    %174 = vmatprep.subr.mxu0 0.0
    %175 = vmatpush1.xpose.msra.mxu0 0.0
    %176 = vmatprep.subr.mxu0 0.0
    %177 = vmatpush1.xpose.msra.mxu0 0.0
    %178 = vmatprep.subr.mxu0 0.0
    %179 = vmatpush1.xpose.msra.mxu0 0.0
    %180 = vmatprep.subr.mxu0 0.0
    %181 = vmatpush1.xpose.msra.mxu0 0.0
    %182 = vmatprep.subr.mxu0 0.0
    %183 = vmatpush1.xpose.msra.mxu0 0.0
    %184 = vmatprep.subr.mxu0 0.0
    %185 = vmatpush1.xpose.msra.mxu0 0.0
    %186 = vmatprep.subr.mxu0 0.0
    %187 = vmatpush1.xpose.msra.mxu0 0.0
    %188 = vmatprep.subr.mxu0 0.0
    %189 = vmatpush1.xpose.msra.mxu0 0.0
    %190 = vmatprep.subr.mxu0 0.0
    %191 = vmatpush1.xpose.msra.mxu0 0.0
    %192 = vmatprep.subr.mxu0 0.0
    %193 = vmatpush1.xpose.msra.mxu0 0.0
    %194 = vmatprep.subr.mxu0 0.0
    %195 = vmatpush1.xpose.msra.mxu0 0.0
    %196 = vmatprep.subr.mxu0 0.0
    %197 = vmatpush1.xpose.msra.mxu0 0.0
    %198 = vmatprep.subr.mxu0 0.0
    %199 = vmatpush1.xpose.msra.mxu0 0.0
    %200 = vmatprep.subr.mxu0 0.0
    %201 = vmatpush1.xpose.msra.mxu0 0.0
    %202 = vmatprep.subr.mxu0 0.0
    %203 = vmatpush1.xpose.msra.mxu0 0.0
    %204 = vmatprep.subr.mxu0 0.0
    %205 = vmatpush1.xpose.msra.mxu0 0.0
    %206 = vmatprep.subr.mxu0 0.0
    %207 = vmatpush1.xpose.msra.mxu0 0.0
    %208 = vmatprep.subr.mxu0 0.0
    %209 = vmatpush1.xpose.msra.mxu0 0.0
    %210 = vmatprep.subr.mxu0 0.0
    %211 = vmatpush1.xpose.msra.mxu0 0.0
    %212 = vmatprep.mubr.f32.mxu0 0.0
    %213 = vmatmul.mubr.f32.gmra.mrb[0].mxu0 %v139
    %v214 = vpop.f32.mrb[0].mxu0
    %v215 = vadd.f32 %v29, %v214
    %v216 = vpop.f32.mrb[0].mxu0
    %217 = vmatprep.mubr.f32.mxu0 0.0
    %218 = vmatmul.mubr.f32.gmra.mrb[0].mxu0 %v142
    %v219 = vpop.f32.mrb[0].mxu0
    %v220 = vadd.f32 %v30, %v219
    %v221 = vpop.f32.mrb[0].mxu0
    %222 = vdwg.mxu0
    %v223 = vsel %vm137, %v215, -inf
    %224 = vmax.xlane.f32.xlu0 %v223
    %v225 = vpop.xlane.xlu0 %224
    %v226 = vsel %vm137, %v220, -inf
    %227 = vmax.xlane.f32.xlu0 %v226
    %v228 = vpop.xlane.xlu0 %227
    %v229 = vsub.f32 %v215, %v225
    %v230 = vsub.f32 %v220, %v228
    %v231 = vmul.f32 %v229, 1.442695
    %v232 = vpow.pop %v231
    %v233 = vmul.f32 %v230, 1.442695
    %v234 = vpow.pop %v233
    %v235 = vsel %vm137, %v232, 0.0
    %236 = vadd.xlane.f32.xlu0 %v235
    %v237 = vpop.xlane.xlu0 %236
    %v238 = vsel %vm137, %v234, 0.0
    %239 = vadd.xlane.f32.xlu0 %v238
    %v240 = vpop.xlane.xlu0 %239
    %v241 = vrcp.pop %v237
    %v242 = vrcp.pop %v240
    %v243 = vmul.f32 %v232, %v241
    %v244 = vmul.f32 %v234, %v242
    %245 = vrot.lane.b32.xlu0 %v121, 64
    %v246 = vpop.permute.xlu0 %245
    %247 = vrot.lane.b32.xlu0 %v126, 64
    %v248 = vpop.permute.xlu0 %247
    %v252 = vsel %vm137, %v243, 0
    %v255 = vsel %vm137, %v244, 0
    %257 = vmatprep.subr.mxu0 0.0
    %258 = vmatpush1.msra.mxu0 %v246
    %259 = vmatprep.subr.mxu0 0.0
    %260 = vmatpush1.msra.mxu0 %v248
    %261 = vmatprep.subr.mxu0 0.0
    %262 = vmatpush1.msra.mxu0 0.0
    %263 = vmatprep.subr.mxu0 0.0
    %264 = vmatpush1.msra.mxu0 0.0
    %265 = vmatprep.subr.mxu0 0.0
    %266 = vmatpush1.msra.mxu0 0.0
    %267 = vmatprep.subr.mxu0 0.0
    %268 = vmatpush1.msra.mxu0 0.0
    %269 = vmatprep.subr.mxu0 0.0
    %270 = vmatpush1.msra.mxu0 0.0
    %271 = vmatprep.subr.mxu0 0.0
    %272 = vmatpush1.msra.mxu0 0.0
    %273 = vmatprep.subr.mxu0 0.0
    %274 = vmatpush1.msra.mxu0 0.0
    %275 = vmatprep.subr.mxu0 0.0
    %276 = vmatpush1.msra.mxu0 0.0
    %277 = vmatprep.subr.mxu0 0.0
    %278 = vmatpush1.msra.mxu0 0.0
    %279 = vmatprep.subr.mxu0 0.0
    %280 = vmatpush1.msra.mxu0 0.0
    %281 = vmatprep.subr.mxu0 0.0
    %282 = vmatpush1.msra.mxu0 0.0
    %283 = vmatprep.subr.mxu0 0.0
    %284 = vmatpush1.msra.mxu0 0.0
    %285 = vmatprep.subr.mxu0 0.0
    %286 = vmatpush1.msra.mxu0 0.0
    %287 = vmatprep.subr.mxu0 0.0
    %288 = vmatpush1.msra.mxu0 0.0
    %289 = vmatprep.subr.mxu0 0.0
    %290 = vmatpush1.msra.mxu0 0.0
    %291 = vmatprep.subr.mxu0 0.0
    %292 = vmatpush1.msra.mxu0 0.0
    %293 = vmatprep.subr.mxu0 0.0
    %294 = vmatpush1.msra.mxu0 0.0
    %295 = vmatprep.subr.mxu0 0.0
    %296 = vmatpush1.msra.mxu0 0.0
    %297 = vmatprep.subr.mxu0 0.0
    %298 = vmatpush1.msra.mxu0 0.0
    %299 = vmatprep.subr.mxu0 0.0
    %300 = vmatpush1.msra.mxu0 0.0
    %301 = vmatprep.subr.mxu0 0.0
    %302 = vmatpush1.msra.mxu0 0.0
    %303 = vmatprep.subr.mxu0 0.0
    %304 = vmatpush1.msra.mxu0 0.0
    %305 = vmatprep.subr.mxu0 0.0
    %306 = vmatpush1.msra.mxu0 0.0
    %307 = vmatprep.subr.mxu0 0.0
    %308 = vmatpush1.msra.mxu0 0.0
    %309 = vmatprep.subr.mxu0 0.0
    %310 = vmatpush1.msra.mxu0 0.0
    %311 = vmatprep.subr.mxu0 0.0
    %312 = vmatpush1.msra.mxu0 0.0
    %313 = vmatprep.subr.mxu0 0.0
    %314 = vmatpush1.msra.mxu0 0.0
    %315 = vmatprep.subr.mxu0 0.0
    %316 = vmatpush1.msra.mxu0 0.0
    %317 = vmatprep.subr.mxu0 0.0
    %318 = vmatpush1.msra.mxu0 0.0
    %319 = vmatprep.subr.mxu0 0.0
    %320 = vmatpush1.msra.mxu0 0.0
    %321 = vmatprep.mubr.f32.mxu0 0.0
    %322 = vmatmul.mubr.f32.gmra.mrb[0].mxu0 %v252
    %v323 = vpop.f32.mrb[0].mxu0
    %v324 = vadd.f32 0.0, %v323
    %v325 = vpop.f32.mrb[0].mxu0
    %326 = vmatprep.mubr.f32.mxu0 0.0
    %327 = vmatmul.mubr.f32.gmra.mrb[0].mxu0 %v255
    %v328 = vpop.f32.mrb[0].mxu0
    %v329 = vadd.f32 0.0, %v328
    %v330 = vpop.f32.mrb[0].mxu0
    %331 = vdwg.mxu0
    %v332 = vld [vmem:[%s3] sm:$0xff]
    %v333 = vld [vmem:[%s3 + $0x8] sm:$0xff]
    %334 = vrot.lane.b32.xlu0 %v129, 112
    %v335 = vpop.permute.xlu0 %334
    %336 = vrot.lane.b32.xlu0 %v130, 112
    %v337 = vpop.permute.xlu0 %336
    %338 = vrot.lane.b32.xlu0 %v121, 80
    %v339 = vpop.permute.xlu0 %338
    %340 = vrot.lane.b32.xlu0 %v126, 80
    %v341 = vpop.permute.xlu0 %340
    %v342 = vsel %vm137, %v335, 0
    %v344 = vsel %vm137, %v337, 0
    %v346 = vsel %vm137, %v339, 0
    %v348 = vsel %vm137, %v341, 0
    %350 = vmatprep.subr.mxu0 0.0
    %351 = vmatpush1.xpose.msra.mxu0 %v346
    %352 = vmatprep.subr.mxu0 0.0
    %353 = vmatpush1.xpose.msra.mxu0 %v348
    %354 = vmatprep.subr.mxu0 0.0
    %355 = vmatpush1.xpose.msra.mxu0 0.0
    %356 = vmatprep.subr.mxu0 0.0
    %357 = vmatpush1.xpose.msra.mxu0 0.0
    %358 = vmatprep.subr.mxu0 0.0
    %359 = vmatpush1.xpose.msra.mxu0 0.0
    %360 = vmatprep.subr.mxu0 0.0
    %361 = vmatpush1.xpose.msra.mxu0 0.0
    %362 = vmatprep.subr.mxu0 0.0
    %363 = vmatpush1.xpose.msra.mxu0 0.0
    %364 = vmatprep.subr.mxu0 0.0
    %365 = vmatpush1.xpose.msra.mxu0 0.0
    %366 = vmatprep.subr.mxu0 0.0
    %367 = vmatpush1.xpose.msra.mxu0 0.0
    %368 = vmatprep.subr.mxu0 0.0
    %369 = vmatpush1.xpose.msra.mxu0 0.0
    %370 = vmatprep.subr.mxu0 0.0
    %371 = vmatpush1.xpose.msra.mxu0 0.0
    %372 = vmatprep.subr.mxu0 0.0
    %373 = vmatpush1.xpose.msra.mxu0 0.0
    %374 = vmatprep.subr.mxu0 0.0
    %375 = vmatpush1.xpose.msra.mxu0 0.0
    %376 = vmatprep.subr.mxu0 0.0
    %377 = vmatpush1.xpose.msra.mxu0 0.0
    %378 = vmatprep.subr.mxu0 0.0
    %379 = vmatpush1.xpose.msra.mxu0 0.0
    %380 = vmatprep.subr.mxu0 0.0
    %381 = vmatpush1.xpose.msra.mxu0 0.0
    %382 = vmatprep.subr.mxu0 0.0
    %383 = vmatpush1.xpose.msra.mxu0 0.0
    %384 = vmatprep.subr.mxu0 0.0
    %385 = vmatpush1.xpose.msra.mxu0 0.0
    %386 = vmatprep.subr.mxu0 0.0
    %387 = vmatpush1.xpose.msra.mxu0 0.0
    %388 = vmatprep.subr.mxu0 0.0
    %389 = vmatpush1.xpose.msra.mxu0 0.0
    %390 = vmatprep.subr.mxu0 0.0
    %391 = vmatpush1.xpose.msra.mxu0 0.0
    %392 = vmatprep.subr.mxu0 0.0
    %393 = vmatpush1.xpose.msra.mxu0 0.0
    %394 = vmatprep.subr.mxu0 0.0
    %395 = vmatpush1.xpose.msra.mxu0 0.0
    %396 = vmatprep.subr.mxu0 0.0
    %397 = vmatpush1.xpose.msra.mxu0 0.0
    %398 = vmatprep.subr.mxu0 0.0
    %399 = vmatpush1.xpose.msra.mxu0 0.0
    %400 = vmatprep.subr.mxu0 0.0
    %401 = vmatpush1.xpose.msra.mxu0 0.0
    %402 = vmatprep.subr.mxu0 0.0
    %403 = vmatpush1.xpose.msra.mxu0 0.0
    %404 = vmatprep.subr.mxu0 0.0
    %405 = vmatpush1.xpose.msra.mxu0 0.0
    %406 = vmatprep.subr.mxu0 0.0
    %407 = vmatpush1.xpose.msra.mxu0 0.0
    %408 = vmatprep.subr.mxu0 0.0
    %409 = vmatpush1.xpose.msra.mxu0 0.0
    %410 = vmatprep.subr.mxu0 0.0
    %411 = vmatpush1.xpose.msra.mxu0 0.0
    %412 = vmatprep.subr.mxu0 0.0
    %413 = vmatpush1.xpose.msra.mxu0 0.0
    %414 = vmatprep.mubr.f32.mxu0 0.0
    %415 = vmatmul.mubr.f32.gmra.mrb[0].mxu0 %v342
    %v416 = vpop.f32.mrb[0].mxu0
    %v417 = vadd.f32 %v29, %v416
    %v418 = vpop.f32.mrb[0].mxu0
    %419 = vmatprep.mubr.f32.mxu0 0.0
    %420 = vmatmul.mubr.f32.gmra.mrb[0].mxu0 %v344
    %v421 = vpop.f32.mrb[0].mxu0
    %v422 = vadd.f32 %v30, %v421
    %v423 = vpop.f32.mrb[0].mxu0
    %424 = vdwg.mxu0
    %v425 = vsel %vm137, %v417, -inf
    %426 = vmax.xlane.f32.xlu0 %v425
    %v427 = vpop.xlane.xlu0 %426
    %v428 = vsel %vm137, %v422, -inf
    %429 = vmax.xlane.f32.xlu0 %v428
    %v430 = vpop.xlane.xlu0 %429
    %v431 = vsub.f32 %v417, %v427
    %v432 = vsub.f32 %v422, %v430
    %v433 = vmul.f32 %v431, 1.442695
    %v434 = vpow.pop %v433
    %v435 = vmul.f32 %v432, 1.442695
    %v436 = vpow.pop %v435
    %v437 = vsel %vm137, %v434, 0.0
    %438 = vadd.xlane.f32.xlu0 %v437
    %v439 = vpop.xlane.xlu0 %438
    %v440 = vsel %vm137, %v436, 0.0
    %441 = vadd.xlane.f32.xlu0 %v440
    %v442 = vpop.xlane.xlu0 %441
    %v443 = vrcp.pop %v439
    %v444 = vrcp.pop %v442
    %v445 = vmul.f32 %v434, %v443
    %v446 = vmul.f32 %v436, %v444
    %447 = vrot.lane.b32.xlu0 %v121, 48
    %v448 = vpop.permute.xlu0 %447
    %449 = vrot.lane.b32.xlu0 %v126, 48
    %v450 = vpop.permute.xlu0 %449
    %v454 = vsel %vm137, %v445, 0
    %v457 = vsel %vm137, %v446, 0
    %459 = vmatprep.subr.mxu0 0.0
    %460 = vmatpush1.msra.mxu0 %v448
    %461 = vmatprep.subr.mxu0 0.0
    %462 = vmatpush1.msra.mxu0 %v450
    %463 = vmatprep.subr.mxu0 0.0
    %464 = vmatpush1.msra.mxu0 0.0
    %465 = vmatprep.subr.mxu0 0.0
    %466 = vmatpush1.msra.mxu0 0.0
    %467 = vmatprep.subr.mxu0 0.0
    %468 = vmatpush1.msra.mxu0 0.0
    %469 = vmatprep.subr.mxu0 0.0
    %470 = vmatpush1.msra.mxu0 0.0
    %471 = vmatprep.subr.mxu0 0.0
    %472 = vmatpush1.msra.mxu0 0.0
    %473 = vmatprep.subr.mxu0 0.0
    %474 = vmatpush1.msra.mxu0 0.0
    %475 = vmatprep.subr.mxu0 0.0
    %476 = vmatpush1.msra.mxu0 0.0
    %477 = vmatprep.subr.mxu0 0.0
    %478 = vmatpush1.msra.mxu0 0.0
    %479 = vmatprep.subr.mxu0 0.0
    %480 = vmatpush1.msra.mxu0 0.0
    %481 = vmatprep.subr.mxu0 0.0
    %482 = vmatpush1.msra.mxu0 0.0
    %483 = vmatprep.subr.mxu0 0.0
    %484 = vmatpush1.msra.mxu0 0.0
    %485 = vmatprep.subr.mxu0 0.0
    %486 = vmatpush1.msra.mxu0 0.0
    %487 = vmatprep.subr.mxu0 0.0
    %488 = vmatpush1.msra.mxu0 0.0
    %489 = vmatprep.subr.mxu0 0.0
    %490 = vmatpush1.msra.mxu0 0.0
    %491 = vmatprep.subr.mxu0 0.0
    %492 = vmatpush1.msra.mxu0 0.0
    %493 = vmatprep.subr.mxu0 0.0
    %494 = vmatpush1.msra.mxu0 0.0
    %495 = vmatprep.subr.mxu0 0.0
    %496 = vmatpush1.msra.mxu0 0.0
    %497 = vmatprep.subr.mxu0 0.0
    %498 = vmatpush1.msra.mxu0 0.0
    %499 = vmatprep.subr.mxu0 0.0
    %500 = vmatpush1.msra.mxu0 0.0
    %501 = vmatprep.subr.mxu0 0.0
    %502 = vmatpush1.msra.mxu0 0.0
    %503 = vmatprep.subr.mxu0 0.0
    %504 = vmatpush1.msra.mxu0 0.0
    %505 = vmatprep.subr.mxu0 0.0
    %506 = vmatpush1.msra.mxu0 0.0
    %507 = vmatprep.subr.mxu0 0.0
    %508 = vmatpush1.msra.mxu0 0.0
    %509 = vmatprep.subr.mxu0 0.0
    %510 = vmatpush1.msra.mxu0 0.0
    %511 = vmatprep.subr.mxu0 0.0
    %512 = vmatpush1.msra.mxu0 0.0
    %513 = vmatprep.subr.mxu0 0.0
    %514 = vmatpush1.msra.mxu0 0.0
    %515 = vmatprep.subr.mxu0 0.0
    %516 = vmatpush1.msra.mxu0 0.0
    %517 = vmatprep.subr.mxu0 0.0
    %518 = vmatpush1.msra.mxu0 0.0
    %519 = vmatprep.subr.mxu0 0.0
    %520 = vmatpush1.msra.mxu0 0.0
    %521 = vmatprep.subr.mxu0 0.0
    %522 = vmatpush1.msra.mxu0 0.0
    %523 = vmatprep.mubr.f32.mxu0 0.0
    %524 = vmatmul.mubr.f32.gmra.mrb[0].mxu0 %v454
    %v525 = vpop.f32.mrb[0].mxu0
    %v526 = vadd.f32 0.0, %v525
    %v527 = vpop.f32.mrb[0].mxu0
    %528 = vmatprep.mubr.f32.mxu0 0.0
    %529 = vmatmul.mubr.f32.gmra.mrb[0].mxu0 %v457
    %v530 = vpop.f32.mrb[0].mxu0
    %v531 = vadd.f32 0.0, %v530
    %v532 = vpop.f32.mrb[0].mxu0
    %533 = vdwg.mxu0
    %v534 = vld [vmem:[%s3 + $0x10] sm:$0xff]
    %v535 = vld [vmem:[%s3 + $0x18] sm:$0xff]
    %v537 = vsel %vm137, %v526, 0
    %v540 = vsel %vm137, %v531, 0
    %542 = vmatprep.subr.mxu0 0.0
    %543 = vmatpush1.msra.mxu0 %v534
    %544 = vmatprep.subr.mxu0 0.0
    %545 = vmatpush1.msra.mxu0 %v535
    %546 = vmatprep.subr.mxu0 0.0
    %547 = vmatpush1.msra.mxu0 0.0
    %548 = vmatprep.subr.mxu0 0.0
    %549 = vmatpush1.msra.mxu0 0.0
    %550 = vmatprep.subr.mxu0 0.0
    %551 = vmatpush1.msra.mxu0 0.0
    %552 = vmatprep.subr.mxu0 0.0
    %553 = vmatpush1.msra.mxu0 0.0
    %554 = vmatprep.subr.mxu0 0.0
    %555 = vmatpush1.msra.mxu0 0.0
    %556 = vmatprep.subr.mxu0 0.0
    %557 = vmatpush1.msra.mxu0 0.0
    %558 = vmatprep.subr.mxu0 0.0
    %559 = vmatpush1.msra.mxu0 0.0
    %560 = vmatprep.subr.mxu0 0.0
    %561 = vmatpush1.msra.mxu0 0.0
    %562 = vmatprep.subr.mxu0 0.0
    %563 = vmatpush1.msra.mxu0 0.0
    %564 = vmatprep.subr.mxu0 0.0
    %565 = vmatpush1.msra.mxu0 0.0
    %566 = vmatprep.subr.mxu0 0.0
    %567 = vmatpush1.msra.mxu0 0.0
    %568 = vmatprep.subr.mxu0 0.0
    %569 = vmatpush1.msra.mxu0 0.0
    %570 = vmatprep.subr.mxu0 0.0
    %571 = vmatpush1.msra.mxu0 0.0
    %572 = vmatprep.subr.mxu0 0.0
    %573 = vmatpush1.msra.mxu0 0.0
    %574 = vmatprep.subr.mxu0 0.0
    %575 = vmatpush1.msra.mxu0 0.0
    %576 = vmatprep.subr.mxu0 0.0
    %577 = vmatpush1.msra.mxu0 0.0
    %578 = vmatprep.subr.mxu0 0.0
    %579 = vmatpush1.msra.mxu0 0.0
    %580 = vmatprep.subr.mxu0 0.0
    %581 = vmatpush1.msra.mxu0 0.0
    %582 = vmatprep.subr.mxu0 0.0
    %583 = vmatpush1.msra.mxu0 0.0
    %584 = vmatprep.subr.mxu0 0.0
    %585 = vmatpush1.msra.mxu0 0.0
    %586 = vmatprep.subr.mxu0 0.0
    %587 = vmatpush1.msra.mxu0 0.0
    %588 = vmatprep.subr.mxu0 0.0
    %589 = vmatpush1.msra.mxu0 0.0
    %590 = vmatprep.subr.mxu0 0.0
    %591 = vmatpush1.msra.mxu0 0.0
    %592 = vmatprep.subr.mxu0 0.0
    %593 = vmatpush1.msra.mxu0 0.0
    %594 = vmatprep.subr.mxu0 0.0
    %595 = vmatpush1.msra.mxu0 0.0
    %596 = vmatprep.subr.mxu0 0.0
    %597 = vmatpush1.msra.mxu0 0.0
    %598 = vmatprep.subr.mxu0 0.0
    %599 = vmatpush1.msra.mxu0 0.0
    %600 = vmatprep.subr.mxu0 0.0
    %601 = vmatpush1.msra.mxu0 0.0
    %602 = vmatprep.subr.mxu0 0.0
    %603 = vmatpush1.msra.mxu0 0.0
    %604 = vmatprep.subr.mxu0 0.0
    %605 = vmatpush1.msra.mxu0 0.0
    %606 = vmatprep.mubr.f32.mxu0 0.0
    %607 = vmatmul.mubr.f32.gmra.mrb[0].mxu0 %v537
    %v608 = vpop.f32.mrb[0].mxu0
    %v609 = vadd.f32 0.0, %v608
    %v610 = vpop.f32.mrb[0].mxu0
    %611 = vmatprep.mubr.f32.mxu0 0.0
    %612 = vmatmul.mubr.f32.gmra.mrb[0].mxu0 %v540
    %v613 = vpop.f32.mrb[0].mxu0
    %v614 = vadd.f32 0.0, %v613
    %v615 = vpop.f32.mrb[0].mxu0
    %616 = vdwg.mxu0
    %v618 = vsel %vm137, %v324, 0
    %v621 = vsel %vm137, %v329, 0
    %623 = vmatprep.subr.mxu0 0.0
    %624 = vmatpush1.msra.mxu0 %v332
    %625 = vmatprep.subr.mxu0 0.0
    %626 = vmatpush1.msra.mxu0 %v333
    %627 = vmatprep.subr.mxu0 0.0
    %628 = vmatpush1.msra.mxu0 0.0
    %629 = vmatprep.subr.mxu0 0.0
    %630 = vmatpush1.msra.mxu0 0.0
    %631 = vmatprep.subr.mxu0 0.0
    %632 = vmatpush1.msra.mxu0 0.0
    %633 = vmatprep.subr.mxu0 0.0
    %634 = vmatpush1.msra.mxu0 0.0
    %635 = vmatprep.subr.mxu0 0.0
    %636 = vmatpush1.msra.mxu0 0.0
    %637 = vmatprep.subr.mxu0 0.0
    %638 = vmatpush1.msra.mxu0 0.0
    %639 = vmatprep.subr.mxu0 0.0
    %640 = vmatpush1.msra.mxu0 0.0
    %641 = vmatprep.subr.mxu0 0.0
    %642 = vmatpush1.msra.mxu0 0.0
    %643 = vmatprep.subr.mxu0 0.0
    %644 = vmatpush1.msra.mxu0 0.0
    %645 = vmatprep.subr.mxu0 0.0
    %646 = vmatpush1.msra.mxu0 0.0
    %647 = vmatprep.subr.mxu0 0.0
    %648 = vmatpush1.msra.mxu0 0.0
    %649 = vmatprep.subr.mxu0 0.0
    %650 = vmatpush1.msra.mxu0 0.0
    %651 = vmatprep.subr.mxu0 0.0
    %652 = vmatpush1.msra.mxu0 0.0
    %653 = vmatprep.subr.mxu0 0.0
    %654 = vmatpush1.msra.mxu0 0.0
    %655 = vmatprep.subr.mxu0 0.0
    %656 = vmatpush1.msra.mxu0 0.0
    %657 = vmatprep.subr.mxu0 0.0
    %658 = vmatpush1.msra.mxu0 0.0
    %659 = vmatprep.subr.mxu0 0.0
    %660 = vmatpush1.msra.mxu0 0.0
    %661 = vmatprep.subr.mxu0 0.0
    %662 = vmatpush1.msra.mxu0 0.0
    %663 = vmatprep.subr.mxu0 0.0
    %664 = vmatpush1.msra.mxu0 0.0
    %665 = vmatprep.subr.mxu0 0.0
    %666 = vmatpush1.msra.mxu0 0.0
    %667 = vmatprep.subr.mxu0 0.0
    %668 = vmatpush1.msra.mxu0 0.0
    %669 = vmatprep.subr.mxu0 0.0
    %670 = vmatpush1.msra.mxu0 0.0
    %671 = vmatprep.subr.mxu0 0.0
    %672 = vmatpush1.msra.mxu0 0.0
    %673 = vmatprep.subr.mxu0 0.0
    %674 = vmatpush1.msra.mxu0 0.0
    %675 = vmatprep.subr.mxu0 0.0
    %676 = vmatpush1.msra.mxu0 0.0
    %677 = vmatprep.subr.mxu0 0.0
    %678 = vmatpush1.msra.mxu0 0.0
    %679 = vmatprep.subr.mxu0 0.0
    %680 = vmatpush1.msra.mxu0 0.0
    %681 = vmatprep.subr.mxu0 0.0
    %682 = vmatpush1.msra.mxu0 0.0
    %683 = vmatprep.subr.mxu0 0.0
    %684 = vmatpush1.msra.mxu0 0.0
    %685 = vmatprep.subr.mxu0 0.0
    %686 = vmatpush1.msra.mxu0 0.0
    %687 = vmatprep.mubr.f32.mxu0 0.0
    %688 = vmatmul.mubr.f32.gmra.mrb[0].mxu0 %v618
    %v689 = vpop.f32.mrb[0].mxu0
    %v690 = vadd.f32 %v609, %v689
    %v691 = vpop.f32.mrb[0].mxu0
    %692 = vmatprep.mubr.f32.mxu0 0.0
    %693 = vmatmul.mubr.f32.gmra.mrb[0].mxu0 %v621
    %v694 = vpop.f32.mrb[0].mxu0
    %v695 = vadd.f32 %v614, %v694
    %v696 = vpop.f32.mrb[0].mxu0
    %697 = vdwg.mxu0
    %v698 = vlaneseq
    %v699 = vshrl.u32 %v698, 7
    %v700 = vsub.s32 0, %v699
    %v701 = vrot.slane %v33, %v700
    %v702 = vadd.f32 %v690, %v701
    %v703 = vadd.f32 %v695, %v701
    %v704 = vadd.f32 %v702, %v27
    %v705 = vadd.f32 %v703, %v28
    %v706 = vsel %vm47, %v704, 0.0
    %707 = vadd.xlane.f32.xlu0 %v706
    %v708 = vpop.xlane.xlu0 %707
    %v709 = vsel %vm47, %v705, 0.0
    %710 = vadd.xlane.f32.xlu0 %v709
    %v711 = vpop.xlane.xlu0 %710
    %v712 = vrcp.pop 32.0
    %v713 = vmul.f32 %v708, %v712
    %v714 = vmul.f32 %v711, %v712
    %v715 = vsub.f32 %v704, %v713
    %v716 = vsub.f32 %v705, %v714
    %v717 = vmul.f32 %v715, %v715
    %v718 = vmul.f32 %v716, %v716
    %v719 = vsel %vm47, %v717, 0.0
    %720 = vadd.xlane.f32.xlu0 %v719
    %v721 = vpop.xlane.xlu0 %720
    %v722 = vsel %vm47, %v718, 0.0
    %723 = vadd.xlane.f32.xlu0 %v722
    %v724 = vpop.xlane.xlu0 %723
    %v725 = vmul.f32 %v721, %v712
    %v726 = vmul.f32 %v724, %v712
    %v727 = vadd.f32 %v725, 1e-12
    %v728 = vadd.f32 %v726, 1e-12
    %v729 = vrsqrt.pop %v727
    %v730 = vrsqrt.pop %v728
    %v731 = vmul.f32 %v715, %v729
    %v732 = vmul.f32 %v716, %v730
    %v733 = vlaneseq
    %v734 = vshrl.u32 %v733, 7
    %v735 = vsub.s32 0, %v734
    %v736 = vrot.slane %v35, %v735
    %v737 = vmul.f32 %v736, %v731
    %v738 = vmul.f32 %v736, %v732
    %v739 = vlaneseq
    %v740 = vshrl.u32 %v739, 7
    %v741 = vsub.s32 0, %v740
    %v742 = vrot.slane %v36, %v741
    %v743 = vadd.f32 %v737, %v742
    %v744 = vadd.f32 %v738, %v742
    %v745 = vld [vmem:[%s4] sm:$0xff]
    %v746 = vld [vmem:[%s4 + $0x8] sm:$0xff]
    %v747 = vld [vmem:[%s4 + $0x10] sm:$0xff]
    %v748 = vld [vmem:[%s4 + $0x18] sm:$0xff]
    %v749 = vlaneseq
    %v750 = vshrl.u32 %v749, 7
    %v751 = vsub.s32 0, %v750
    %v752 = vrot.slane %v32, %v751
    %v754 = vsel %vm47, %v743, 0
    %v757 = vsel %vm47, %v744, 0
    %759 = vmatprep.subr.mxu0 0.0
    %760 = vmatpush1.msra.mxu0 %v745
    %761 = vmatprep.subr.mxu0 0.0
    %762 = vmatpush1.msra.mxu0 %v746
    %763 = vmatprep.subr.mxu0 0.0
    %764 = vmatpush1.msra.mxu0 %v747
    %765 = vmatprep.subr.mxu0 0.0
    %766 = vmatpush1.msra.mxu0 %v748
    %767 = vmatprep.subr.mxu0 0.0
    %768 = vmatpush1.msra.mxu0 0.0
    %769 = vmatprep.subr.mxu0 0.0
    %770 = vmatpush1.msra.mxu0 0.0
    %771 = vmatprep.subr.mxu0 0.0
    %772 = vmatpush1.msra.mxu0 0.0
    %773 = vmatprep.subr.mxu0 0.0
    %774 = vmatpush1.msra.mxu0 0.0
    %775 = vmatprep.subr.mxu0 0.0
    %776 = vmatpush1.msra.mxu0 0.0
    %777 = vmatprep.subr.mxu0 0.0
    %778 = vmatpush1.msra.mxu0 0.0
    %779 = vmatprep.subr.mxu0 0.0
    %780 = vmatpush1.msra.mxu0 0.0
    %781 = vmatprep.subr.mxu0 0.0
    %782 = vmatpush1.msra.mxu0 0.0
    %783 = vmatprep.subr.mxu0 0.0
    %784 = vmatpush1.msra.mxu0 0.0
    %785 = vmatprep.subr.mxu0 0.0
    %786 = vmatpush1.msra.mxu0 0.0
    %787 = vmatprep.subr.mxu0 0.0
    %788 = vmatpush1.msra.mxu0 0.0
    %789 = vmatprep.subr.mxu0 0.0
    %790 = vmatpush1.msra.mxu0 0.0
    %791 = vmatprep.subr.mxu0 0.0
    %792 = vmatpush1.msra.mxu0 0.0
    %793 = vmatprep.subr.mxu0 0.0
    %794 = vmatpush1.msra.mxu0 0.0
    %795 = vmatprep.subr.mxu0 0.0
    %796 = vmatpush1.msra.mxu0 0.0
    %797 = vmatprep.subr.mxu0 0.0
    %798 = vmatpush1.msra.mxu0 0.0
    %799 = vmatprep.subr.mxu0 0.0
    %800 = vmatpush1.msra.mxu0 0.0
    %801 = vmatprep.subr.mxu0 0.0
    %802 = vmatpush1.msra.mxu0 0.0
    %803 = vmatprep.subr.mxu0 0.0
    %804 = vmatpush1.msra.mxu0 0.0
    %805 = vmatprep.subr.mxu0 0.0
    %806 = vmatpush1.msra.mxu0 0.0
    %807 = vmatprep.subr.mxu0 0.0
    %808 = vmatpush1.msra.mxu0 0.0
    %809 = vmatprep.subr.mxu0 0.0
    %810 = vmatpush1.msra.mxu0 0.0
    %811 = vmatprep.subr.mxu0 0.0
    %812 = vmatpush1.msra.mxu0 0.0
    %813 = vmatprep.subr.mxu0 0.0
    %814 = vmatpush1.msra.mxu0 0.0
    %815 = vmatprep.subr.mxu0 0.0
    %816 = vmatpush1.msra.mxu0 0.0
    %817 = vmatprep.subr.mxu0 0.0
    %818 = vmatpush1.msra.mxu0 0.0
    %819 = vmatprep.subr.mxu0 0.0
    %820 = vmatpush1.msra.mxu0 0.0
    %821 = vmatprep.subr.mxu0 0.0
    %822 = vmatpush1.msra.mxu0 0.0
    %823 = vmatprep.mubr.f32.mxu0 0.0
    %824 = vmatmul.mubr.f32.gmra.mrb[0].mxu0 %v754
    %v825 = vpop.f32.mrb[0].mxu0
    %v826 = vadd.f32 %v752, %v825
    %v827 = vpop.f32.mrb[0].mxu0
    %828 = vmatprep.mubr.f32.mxu0 0.0
    %829 = vmatmul.mubr.f32.gmra.mrb[0].mxu0 %v757
    %v830 = vpop.f32.mrb[0].mxu0
    %v831 = vadd.f32 %v752, %v830
    %v832 = vpop.f32.mrb[0].mxu0
    %833 = vdwg.mxu0
    %v834 = vmul.f32 %v826, 0.5
    %v835 = vmul.f32 %v831, 0.5
    %v836 = vrcp.pop 1.4142135
    %v837 = vmul.f32 %v826, %v836
    %v838 = vmul.f32 %v831, %v836
    %v839 = verf.f32.pop %v837
    %v840 = verf.f32.pop %v838
    %v841 = vadd.f32 %v839, 1.0
    %v842 = vadd.f32 %v840, 1.0
    %v843 = vmul.f32 %v834, %v841
    %v844 = vmul.f32 %v835, %v842
    %v845 = vld [vmem:[%s5] sm:$0xff]
    %v846 = vld [vmem:[%s5 + $0x8] sm:$0xff]
    %v847 = vld [vmem:[%s5 + $0x10] sm:$0xff]
    %v848 = vld [vmem:[%s5 + $0x18] sm:$0xff]
    %v849 = vld [vmem:[%s5 + $0x20] sm:$0xff]
    %v850 = vld [vmem:[%s5 + $0x28] sm:$0xff]
    %v851 = vld [vmem:[%s5 + $0x30] sm:$0xff]
    %v852 = vld [vmem:[%s5 + $0x38] sm:$0xff]
    %v853 = vld [vmem:[%s5 + $0x40] sm:$0xff]
    %v854 = vld [vmem:[%s5 + $0x48] sm:$0xff]
    %v855 = vld [vmem:[%s5 + $0x50] sm:$0xff]
    %v856 = vld [vmem:[%s5 + $0x58] sm:$0xff]
    %v857 = vld [vmem:[%s5 + $0x60] sm:$0xff]
    %v858 = vld [vmem:[%s5 + $0x68] sm:$0xff]
    %v859 = vld [vmem:[%s5 + $0x70] sm:$0xff]
    %v860 = vld [vmem:[%s5 + $0x78] sm:$0xff]
    %v861 = vlaneseq
    %v862 = vshrl.u32 %v861, 7
    %v863 = vsub.s32 0, %v862
    %v864 = vrot.slane %v34, %v863
    %865 = vmatprep.subr.mxu0 0.0
    %866 = vmatpush1.msra.mxu0 %v845
    %867 = vmatprep.subr.mxu0 0.0
    %868 = vmatpush1.msra.mxu0 %v846
    %869 = vmatprep.subr.mxu0 0.0
    %870 = vmatpush1.msra.mxu0 %v847
    %871 = vmatprep.subr.mxu0 0.0
    %872 = vmatpush1.msra.mxu0 %v848
    %873 = vmatprep.subr.mxu0 0.0
    %874 = vmatpush1.msra.mxu0 %v849
    %875 = vmatprep.subr.mxu0 0.0
    %876 = vmatpush1.msra.mxu0 %v850
    %877 = vmatprep.subr.mxu0 0.0
    %878 = vmatpush1.msra.mxu0 %v851
    %879 = vmatprep.subr.mxu0 0.0
    %880 = vmatpush1.msra.mxu0 %v852
    %881 = vmatprep.subr.mxu0 0.0
    %882 = vmatpush1.msra.mxu0 %v853
    %883 = vmatprep.subr.mxu0 0.0
    %884 = vmatpush1.msra.mxu0 %v854
    %885 = vmatprep.subr.mxu0 0.0
    %886 = vmatpush1.msra.mxu0 %v855
    %887 = vmatprep.subr.mxu0 0.0
    %888 = vmatpush1.msra.mxu0 %v856
    %889 = vmatprep.subr.mxu0 0.0
    %890 = vmatpush1.msra.mxu0 %v857
    %891 = vmatprep.subr.mxu0 0.0
    %892 = vmatpush1.msra.mxu0 %v858
    %893 = vmatprep.subr.mxu0 0.0
    %894 = vmatpush1.msra.mxu0 %v859
    %895 = vmatprep.subr.mxu0 0.0
    %896 = vmatpush1.msra.mxu0 %v860
    %897 = vmatprep.subr.mxu0 0.0
    %898 = vmatpush1.msra.mxu0 0.0
    %899 = vmatprep.subr.mxu0 0.0
    %900 = vmatpush1.msra.mxu0 0.0
    %901 = vmatprep.subr.mxu0 0.0
    %902 = vmatpush1.msra.mxu0 0.0
    %903 = vmatprep.subr.mxu0 0.0
    %904 = vmatpush1.msra.mxu0 0.0
    %905 = vmatprep.subr.mxu0 0.0
    %906 = vmatpush1.msra.mxu0 0.0
    %907 = vmatprep.subr.mxu0 0.0
    %908 = vmatpush1.msra.mxu0 0.0
    %909 = vmatprep.subr.mxu0 0.0
    %910 = vmatpush1.msra.mxu0 0.0
    %911 = vmatprep.subr.mxu0 0.0
    %912 = vmatpush1.msra.mxu0 0.0
    %913 = vmatprep.subr.mxu0 0.0
    %914 = vmatpush1.msra.mxu0 0.0
    %915 = vmatprep.subr.mxu0 0.0
    %916 = vmatpush1.msra.mxu0 0.0
    %917 = vmatprep.subr.mxu0 0.0
    %918 = vmatpush1.msra.mxu0 0.0
    %919 = vmatprep.subr.mxu0 0.0
    %920 = vmatpush1.msra.mxu0 0.0
    %921 = vmatprep.subr.mxu0 0.0
    %922 = vmatpush1.msra.mxu0 0.0
    %923 = vmatprep.subr.mxu0 0.0
    %924 = vmatpush1.msra.mxu0 0.0
    %925 = vmatprep.subr.mxu0 0.0
    %926 = vmatpush1.msra.mxu0 0.0
    %927 = vmatprep.subr.mxu0 0.0
    %928 = vmatpush1.msra.mxu0 0.0
    %929 = vmatprep.mubr.f32.mxu0 0.0
    %930 = vmatmul.mubr.f32.gmra.mrb[0].mxu0 %v843
    %v931 = vpop.f32.mrb[0].mxu0
    %v932 = vadd.f32 %v864, %v931
    %v933 = vpop.f32.mrb[0].mxu0
    %934 = vmatprep.mubr.f32.mxu0 0.0
    %935 = vmatmul.mubr.f32.gmra.mrb[0].mxu0 %v844
    %v936 = vpop.f32.mrb[0].mxu0
    %v937 = vadd.f32 %v864, %v936
    %v938 = vpop.f32.mrb[0].mxu0
    %939 = vdwg.mxu0
    %v940 = vadd.f32 %v932, %v743
    %v941 = vadd.f32 %v937, %v744
    %v942 = vsel %vm47, %v940, 0.0
    %943 = vadd.xlane.f32.xlu0 %v942
    %v944 = vpop.xlane.xlu0 %943
    %v945 = vsel %vm47, %v941, 0.0
    %946 = vadd.xlane.f32.xlu0 %v945
    %v947 = vpop.xlane.xlu0 %946
    %v948 = vmul.f32 %v944, %v712
    %v949 = vmul.f32 %v947, %v712
    %v950 = vsub.f32 %v940, %v948
    %v951 = vsub.f32 %v941, %v949
    %v952 = vmul.f32 %v950, %v950
    %v953 = vmul.f32 %v951, %v951
    %v954 = vsel %vm47, %v952, 0.0
    %955 = vadd.xlane.f32.xlu0 %v954
    %v956 = vpop.xlane.xlu0 %955
    %v957 = vsel %vm47, %v953, 0.0
    %958 = vadd.xlane.f32.xlu0 %v957
    %v959 = vpop.xlane.xlu0 %958
    %v960 = vmul.f32 %v956, %v712
    %v961 = vmul.f32 %v959, %v712
    %v962 = vadd.f32 %v960, 1e-12
    %v963 = vadd.f32 %v961, 1e-12
    %v964 = vrsqrt.pop %v962
    %v965 = vrsqrt.pop %v963
    %v966 = vmul.f32 %v950, %v964
    %v967 = vmul.f32 %v951, %v965
    %v968 = vlaneseq
    %v969 = vshrl.u32 %v968, 7
    %v970 = vsub.s32 0, %v969
    %v971 = vrot.slane %v37, %v970
    %v972 = vmul.f32 %v971, %v966
    %v973 = vmul.f32 %v971, %v967
    %v974 = vlaneseq
    %v975 = vshrl.u32 %v974, 7
    %v976 = vsub.s32 0, %v975
    %v977 = vrot.slane %v38, %v976
    %v978 = vadd.f32 %v972, %v977
    %v979 = vadd.f32 %v973, %v977
    %980 = vst.msk [vmem:[#allocation2] sm:$0xff] %vm47, %v978
    %981 = vst.msk [vmem:[#allocation2 + $0x8] sm:$0xff] %vm47, %v979
    // Predicated region
    $region30: #{transformer_layer.1} parent=1 // pred_check
      _
    $region31: #{transformer_layer.1} parent=1 // pred_check_branch
      %983 = sbr.rel (0) target = $region33
    $region32: #{transformer_layer.1} parent=1 // pred_region
      %s985 = ssub.s32 256, 256
      %986 = vsyncadd [#allocation3], %s985
      %s987 = sshll.u32 [#allocation2], 4
      %s988 = int_to_ptr.vmem [resolvable:$true] %s987
      %993 = dma.vmem_to_hbm [thread:$0]  %s988, 256, %s7, [#allocation3], 128, 128, 8
    $region33: #{transformer_layer.1} parent=1 // pred_fallthru
      _
    // Predicated region
    $region34: #{transformer_layer.1} parent=1 // pred_check
      _
    $region35: #{transformer_layer.1} parent=1 // pred_check_branch
      %995 = sbr.rel (0) target = $region37
    $region36: #{transformer_layer.1} parent=1 // pred_region
      %996 = dma.done [#allocation3], 256
    $region37: #{transformer_layer.1} parent=1 // pred_fallthru
      _
    %997 = vsyncpa [#allocation3], 1

</llo_original>
